<compile_context>
chip_gen: v7x
topology: tpu7x:2x2x1
jax: 0.10.0
libtpu: 0.0.40
codegen_flags: <defaults>
</compile_context>

<pallas_src>
import functools

import jax
import jax.numpy as jnp
from jax.experimental import pallas as pl
from jax.experimental.pallas import tpu as pltpu


def _round_up(x, m):
    return (x + m - 1) // m * m


def _pairwise_loss_kernel(xi_ref, xj_ref, sqi_ref, sqj_ref, tcol_ref, trow_ref,
                          out_ref, acc_ref, *, margin, n_valid, tile):
    i = pl.program_id(0)
    j = pl.program_id(1)

    # Zero the per-i-block row-sum accumulator at the start of the j reduction.
    @pl.when(j == 0)
    def _():
        acc_ref[...] = jnp.zeros_like(acc_ref)

    # Pairwise squared distances via the Gram matrix (MXU, f32 accumulation):
    #   d_ij = ||x_i||^2 + ||x_j||^2 - 2 <x_i, x_j>
    gram = jax.lax.dot_general(
        xi_ref[...], xj_ref[...],
        dimension_numbers=(((1,), (1,)), ((), ())),
        preferred_element_type=jnp.float32)                     # (T, T)
    dist = sqi_ref[...] + sqj_ref[...] - 2.0 * gram             # (T,1)+(1,T)-(T,T)
    dist = jnp.maximum(dist, 0.0)                               # kill rounding negatives

    # Same-class mask and hinge; select() instead of R*d + (1-R)*h saves VPU ops.
    same = tcol_ref[...] == trow_ref[...]                       # (T, T) bool
    hinge = jnp.maximum(margin - dist, 0.0)
    loss = jnp.where(same, dist, hinge)

    # Mask padded rows/cols and the diagonal (diagonal contributes exactly 0
    # in the reference; masking it removes Gram-trick rounding noise).
    gi = i * tile + jax.lax.broadcasted_iota(jnp.int32, (tile, tile), 0)
    gj = j * tile + jax.lax.broadcasted_iota(jnp.int32, (tile, tile), 1)
    keep = (gi < n_valid) & (gj < n_valid) & (gi != gj)
    loss = jnp.where(keep, loss, 0.0)

    # Accumulate per-row partial sums (lane reduction) in VMEM scratch.
    acc_ref[...] += jnp.sum(loss, axis=1, keepdims=True)        # (T, 1)

    # Write the partial sums for this i-block once, at the last j step.
    @pl.when(j == pl.num_programs(1) - 1)
    def _():
        out_ref[...] = acc_ref[...]


def pairwise_loss(inputs, target, margin=0.5, tile=512):
    """inputs: (N, D) float array; target: (N,) integer labels. Returns scalar f32."""
    n, d = inputs.shape

    # Square tiles, multiple of 128 (lane) / 8 (sublane), shrunk for tiny N.
    t = min(tile, _round_up(max(n, 1), 128))
    n_pad = _round_up(n, t)

    x = inputs
    tgt = target.astype(jnp.int32)
    if n_pad != n:
        x = jnp.pad(x, ((0, n_pad - n), (0, 0)))
        tgt = jnp.pad(tgt, (0, n_pad - n), constant_values=-1)

    # Prologue: squared row norms computed once (O(N*D)), fed to every tile.
    xf = x.astype(jnp.float32)
    sq = jnp.sum(xf * xf, axis=1)
    sq_col = sq.reshape(n_pad, 1)
    sq_row = sq.reshape(1, n_pad)
    t_col = tgt.reshape(n_pad, 1)
    t_row = tgt.reshape(1, n_pad)

    n_blk = n_pad // t

    kernel = functools.partial(_pairwise_loss_kernel,
                               margin=float(margin), n_valid=n, tile=t)

    partials = pl.pallas_call(
        kernel,
        grid_spec=pltpu.PrefetchScalarGridSpec(
            num_scalar_prefetch=0,
            grid=(n_blk, n_blk),                              # j (reduction) innermost
            in_specs=[
                pl.BlockSpec((t, d), lambda i, j: (i, 0)),    # x rows, i tile
                pl.BlockSpec((t, d), lambda i, j: (j, 0)),    # x rows, j tile
                pl.BlockSpec((t, 1), lambda i, j: (i, 0)),    # ||x_i||^2 column
                pl.BlockSpec((1, t), lambda i, j: (0, j)),    # ||x_j||^2 row
                pl.BlockSpec((t, 1), lambda i, j: (i, 0)),    # target column
                pl.BlockSpec((1, t), lambda i, j: (0, j)),    # target row
            ],
            out_specs=pl.BlockSpec((t, 1), lambda i, j: (i, 0)),
            scratch_shapes=[pltpu.VMEM((t, 1), jnp.float32)],  # row-sum accumulator
        ),
        out_shape=jax.ShapeDtypeStruct((n_pad, 1), jnp.float32),
        compiler_params=pltpu.CompilerParams(
            dimension_semantics=("parallel", "arbitrary")),
    )(x, x, sq_col, sq_row, t_col, t_row)

    # Final reduction of per-row partials + single multiply by 1/denominator.
    inv_denom = 1.0 / (n * (n - 1.0) * 2.0)
    return jnp.sum(partials) * inv_denom


def _pairwise_loss_ref(inputs, target, margin=0.5):
    """Plain-JAX reference mirroring the PyTorch forward."""
    R = (target[None, :] == target[:, None]).astype(jnp.float32)
    diff = inputs[None, :, :] - inputs[:, None, :]
    dist = jnp.sum(diff * diff, axis=2)
    loss = R * dist + (1.0 - R) * jnp.maximum(margin - dist, 0.0)
    n = inputs.shape[0]
    return jnp.sum(loss) / (n * (n - 1.0) * 2.0)


if __name__ == "__main__":
    key = jax.random.PRNGKey(0)
    k_x, k_t = jax.random.split(key)

    # Small shape consistent with the module: N embeddings of dim D + labels.
    N, D = 8, 32
    inputs = jax.random.normal(k_x, (N, D), dtype=jnp.float32)
    target = jax.random.randint(k_t, (N,), 0, 3, dtype=jnp.int32)

    out = jax.block_until_ready(pairwise_loss(inputs, target, margin=0.5))
    ref = _pairwise_loss_ref(inputs, target, margin=0.5)
    assert jnp.allclose(out, ref, rtol=5e-3, atol=1e-3), (out, ref)

    # Exercise the multi-tile path: padding, masking, j-accumulation, 2x2 grid.
    N2, D2 = 200, 32
    k_x2, k_t2 = jax.random.split(k_x)
    inputs2 = jax.random.normal(k_x2, (N2, D2), dtype=jnp.float32)
    target2 = jax.random.randint(k_t2, (N2,), 0, 5, dtype=jnp.int32)
    out2 = jax.block_until_ready(pairwise_loss(inputs2, target2, margin=0.5, tile=128))
    ref2 = _pairwise_loss_ref(inputs2, target2, margin=0.5)
    assert jnp.allclose(out2, ref2, rtol=5e-3, atol=1e-3), (out2, ref2)

    print("KERNEL_OK")
</pallas_src>

<mosaic_0001>
module attributes {stable_mosaic.version = 11 : i64} {
  func.func @_pairwise_loss_kernel(%arg0: i32, %arg1: i32, %arg2: memref<128x32xf32, #tpu.memory_space<vmem>>, %arg3: memref<128x32xf32, #tpu.memory_space<vmem>>, %arg4: memref<128x1xf32, #tpu.memory_space<vmem>>, %arg5: memref<1x128xf32, #tpu.memory_space<vmem>>, %arg6: memref<128x1xi32, #tpu.memory_space<vmem>>, %arg7: memref<1x128xi32, #tpu.memory_space<vmem>>, %arg8: memref<128x1xf32, #tpu.memory_space<vmem>>, %arg9: memref<128x1xf32, #tpu.memory_space<vmem>>) attributes {dimension_semantics = [#tpu.dimension_semantics<parallel>, #tpu.dimension_semantics<arbitrary>], iteration_bounds = array<i64: 1, 1>, scalar_prefetch = 0 : i64, scratch_operands = 1 : i64, tpu.core_type = #tpu.core_type<tc>, window_params = [{transform_indices = @transform_0, window_bounds = array<i64: 128, 32>}, {transform_indices = @transform_1, window_bounds = array<i64: 128, 32>}, {transform_indices = @transform_2, window_bounds = array<i64: 128, 1>}, {transform_indices = @transform_3, window_bounds = array<i64: 1, 128>}, {transform_indices = @transform_4, window_bounds = array<i64: 128, 1>}, {transform_indices = @transform_5, window_bounds = array<i64: 1, 128>}, {transform_indices = @transform_6, window_bounds = array<i64: 128, 1>}]} {
    %c0_i32 = arith.constant 0 : i32
    %0 = arith.cmpi eq, %arg1, %c0_i32 : i32
    %1 = arith.extui %0 : i1 to i32
    %c0_i32_0 = arith.constant 0 : i32
    %2 = arith.cmpi ne, %1, %c0_i32_0 : i32
    scf.if %2 {
      %cst_26 = arith.constant 0.000000e+00 : f32
      %51 = vector.broadcast %cst_26 : f32 to vector<128x1xf32>
      %c0_27 = arith.constant 0 : index
      %c0_28 = arith.constant 0 : index
      %52 = vector.load %arg9[%c0_27, %c0_28] : memref<128x1xf32, #tpu.memory_space<vmem>>, vector<128x1xf32>
      tpu.vector_store %arg9[%c0_27, %c0_28], %51 {strides = array<i32>} : memref<128x1xf32, #tpu.memory_space<vmem>>, vector<128x1xf32>,
    } else {
    }
    %c0 = arith.constant 0 : index
    %c0_1 = arith.constant 0 : index
    %3 = vector.load %arg2[%c0, %c0_1] : memref<128x32xf32, #tpu.memory_space<vmem>>, vector<128x32xf32>
    %c0_2 = arith.constant 0 : index
    %c0_3 = arith.constant 0 : index
    %4 = vector.load %arg3[%c0_2, %c0_3] : memref<128x32xf32, #tpu.memory_space<vmem>>, vector<128x32xf32>
    %cst = arith.constant dense<0.000000e+00> : vector<128x128xf32>
    %5 = tpu.matmul %3, %4, %cst {dimension_numbers = #tpu.dot_dimension_numbers<[1], [1], [0], [0], [0, 0, 1, 0], [], []>} : vector<128x32xf32>, vector<128x32xf32>, vector<128x128xf32> -> vector<128x128xf32>
    %c0_4 = arith.constant 0 : index
    %c0_5 = arith.constant 0 : index
    %6 = vector.load %arg4[%c0_4, %c0_5] : memref<128x1xf32, #tpu.memory_space<vmem>>, vector<128x1xf32>
    %c0_6 = arith.constant 0 : index
    %c0_7 = arith.constant 0 : index
    %7 = vector.load %arg5[%c0_6, %c0_7] : memref<1x128xf32, #tpu.memory_space<vmem>>, vector<1x128xf32>
    %8 = vector.broadcast %6 : vector<128x1xf32> to vector<128x128xf32>
    %9 = vector.broadcast %7 : vector<1x128xf32> to vector<128x128xf32>
    %10 = arith.addf %8, %9 : vector<128x128xf32>
    %cst_8 = arith.constant 2.000000e+00 : f32
    %11 = vector.broadcast %cst_8 : f32 to vector<128x128xf32>
    %12 = arith.mulf %11, %5 : vector<128x128xf32>
    %13 = arith.subf %10, %12 : vector<128x128xf32>
    %cst_9 = arith.constant 0.000000e+00 : f32
    %14 = vector.broadcast %cst_9 : f32 to vector<128x128xf32>
    %15 = arith.maximumf %13, %14 : vector<128x128xf32>
    %c0_10 = arith.constant 0 : index
    %c0_11 = arith.constant 0 : index
    %16 = vector.load %arg6[%c0_10, %c0_11] : memref<128x1xi32, #tpu.memory_space<vmem>>, vector<128x1xi32>
    %c0_12 = arith.constant 0 : index
    %c0_13 = arith.constant 0 : index
    %17 = vector.load %arg7[%c0_12, %c0_13] : memref<1x128xi32, #tpu.memory_space<vmem>>, vector<1x128xi32>
    %18 = vector.broadcast %16 : vector<128x1xi32> to vector<128x128xi32>
    %19 = vector.broadcast %17 : vector<1x128xi32> to vector<128x128xi32>
    %20 = arith.cmpi eq, %18, %19 : vector<128x128xi32>
    %cst_14 = arith.constant 5.000000e-01 : f32
    %21 = vector.broadcast %cst_14 : f32 to vector<128x128xf32>
    %22 = arith.subf %21, %15 : vector<128x128xf32>
    %cst_15 = arith.constant 0.000000e+00 : f32
    %23 = vector.broadcast %cst_15 : f32 to vector<128x128xf32>
    %24 = arith.maximumf %22, %23 : vector<128x128xf32>
    %25 = arith.select %20, %15, %24 : vector<128x128xi1>, vector<128x128xf32>
    %c128_i32 = arith.constant 128 : i32
    %26 = arith.muli %arg0, %c128_i32 : i32
    %27 = tpu.iota {dimensions = array<i32: 0>} : vector<128x128xi32>
    %28 = vector.broadcast %26 : i32 to vector<128x128xi32>
    %29 = arith.addi %28, %27 : vector<128x128xi32>
    %c128_i32_16 = arith.constant 128 : i32
    %30 = arith.muli %arg1, %c128_i32_16 : i32
    %31 = tpu.iota {dimensions = array<i32: 1>} : vector<128x128xi32>
    %32 = vector.broadcast %30 : i32 to vector<128x128xi32>
    %33 = arith.addi %32, %31 : vector<128x128xi32>
    %c8_i32 = arith.constant 8 : i32
    %34 = vector.broadcast %c8_i32 : i32 to vector<128x128xi32>
    %35 = arith.cmpi slt, %29, %34 : vector<128x128xi32>
    %c8_i32_17 = arith.constant 8 : i32
    %36 = vector.broadcast %c8_i32_17 : i32 to vector<128x128xi32>
    %37 = arith.cmpi slt, %33, %36 : vector<128x128xi32>
    %38 = arith.andi %35, %37 : vector<128x128xi1>
    %39 = arith.cmpi ne, %29, %33 : vector<128x128xi32>
    %40 = arith.andi %38, %39 : vector<128x128xi1>
    %cst_18 = arith.constant 0.000000e+00 : f32
    %41 = vector.broadcast %cst_18 : f32 to vector<128x128xf32>
    %42 = arith.select %40, %25, %41 : vector<128x128xi1>, vector<128x128xf32>
    %c0_19 = arith.constant 0 : index
    %c0_20 = arith.constant 0 : index
    %43 = vector.load %arg9[%c0_19, %c0_20] : memref<128x1xf32, #tpu.memory_space<vmem>>, vector<128x1xf32>
    %cst_21 = arith.constant dense<0.000000e+00> : vector<128xf32>
    %44 = vector.multi_reduction <add>, %42, %cst_21 [1] : vector<128x128xf32> to vector<128xf32>
    %45 = vector.shape_cast %44 : vector<128xf32> to vector<128x1xf32>
    %46 = arith.addf %43, %45 : vector<128x1xf32>
    %c0_22 = arith.constant 0 : index
    %c0_23 = arith.constant 0 : index
    %47 = vector.load %arg9[%c0_22, %c0_23] : memref<128x1xf32, #tpu.memory_space<vmem>>, vector<128x1xf32>
    tpu.vector_store %arg9[%c0_22, %c0_23], %46 {strides = array<i32>} : memref<128x1xf32, #tpu.memory_space<vmem>>, vector<128x1xf32>,
    %c0_i32_24 = arith.constant 0 : i32
    %48 = arith.cmpi eq, %arg1, %c0_i32_24 : i32
    %49 = arith.extui %48 : i1 to i32
    %c0_i32_25 = arith.constant 0 : i32
    %50 = arith.cmpi ne, %49, %c0_i32_25 : i32
    scf.if %50 {
      %c0_26 = arith.constant 0 : index
      %c0_27 = arith.constant 0 : index
      %51 = vector.load %arg9[%c0_26, %c0_27] : memref<128x1xf32, #tpu.memory_space<vmem>>, vector<128x1xf32>
      %c0_28 = arith.constant 0 : index
      %c0_29 = arith.constant 0 : index
      %52 = vector.load %arg8[%c0_28, %c0_29] : memref<128x1xf32, #tpu.memory_space<vmem>>, vector<128x1xf32>
      tpu.vector_store %arg8[%c0_28, %c0_29], %51 {strides = array<i32>} : memref<128x1xf32, #tpu.memory_space<vmem>>, vector<128x1xf32>,
    } else {
    }
    return
  }
  func.func @transform_0(%arg0: i32, %arg1: i32) -> (i32, i32) {
    %c0_i32 = arith.constant 0 : i32
    %c0_i32_0 = arith.constant 0 : i32
    return %arg0, %c0_i32 : i32, i32
  }
  func.func @transform_1(%arg0: i32, %arg1: i32) -> (i32, i32) {
    %c0_i32 = arith.constant 0 : i32
    %c0_i32_0 = arith.constant 0 : i32
    return %arg1, %c0_i32 : i32, i32
  }
  func.func @transform_2(%arg0: i32, %arg1: i32) -> (i32, i32) {
    %c0_i32 = arith.constant 0 : i32
    %c0_i32_0 = arith.constant 0 : i32
    return %arg0, %c0_i32 : i32, i32
  }
  func.func @transform_3(%arg0: i32, %arg1: i32) -> (i32, i32) {
    %c0_i32 = arith.constant 0 : i32
    %c0_i32_0 = arith.constant 0 : i32
    return %c0_i32, %arg1 : i32, i32
  }
  func.func @transform_4(%arg0: i32, %arg1: i32) -> (i32, i32) {
    %c0_i32 = arith.constant 0 : i32
    %c0_i32_0 = arith.constant 0 : i32
    return %arg0, %c0_i32 : i32, i32
  }
  func.func @transform_5(%arg0: i32, %arg1: i32) -> (i32, i32) {
    %c0_i32 = arith.constant 0 : i32
    %c0_i32_0 = arith.constant 0 : i32
    return %c0_i32, %arg1 : i32, i32
  }
  func.func @transform_6(%arg0: i32, %arg1: i32) -> (i32, i32) {
    %c0_i32 = arith.constant 0 : i32
    %c0_i32_0 = arith.constant 0 : i32
    return %arg0, %c0_i32 : i32, i32
  }
}

</mosaic_0001>

<llo_original>
// kernel: tpu_custom_call.1
$region0: #{tpu_custom_call.1}
  #allocation0 [shape = 'u32[]', space=smem, size = 0x4, offset = 0x4, fixed_abs, tag = 'smem constant byte address 0x4 - core index']
  #allocation1 [shape = 'u32[144,128]{1,0:T(1,128)}', space=vmem, size = 0x12000, scoped, tag = 'internal scratch']
  #allocation2 [shape = 'f32[128,1]{1,0:T(8,128)}', space=vmem, size = 0x10000, scoped, tag = 'scratch operand']
  %s0 = inlined_call_operand.vmem [shape: f32[128,32], index: 0, kind: input, shape index: {}]
  %s1 = inlined_call_operand.vmem [shape: f32[128,32], index: 1, kind: input, shape index: {}]
  %s2 = inlined_call_operand.vmem [shape: f32[128,1], index: 2, kind: input, shape index: {}]
  %s3 = inlined_call_operand.vmem [shape: f32[1,128], index: 3, kind: input, shape index: {}]
  %s4 = inlined_call_operand.vmem [shape: s32[128,1], index: 4, kind: input, shape index: {}]
  %s5 = inlined_call_operand.vmem [shape: s32[1,128], index: 5, kind: input, shape index: {}]
  %s6 = inlined_call_operand.vmem [shape: f32[128,1], index: 6, kind: output, shape index: {}]
  %s7 = sld [smem:[#allocation0]]
  $region42: #{tpu_custom_call.1} parent=0
    _
  %s9 = ssub.s32 1, %s7
  %s10 = scalar_select 0, %s9, %s7
  // Predicated region
  $region2: #{tpu_custom_call.1} parent=0 // pred_check
    _
  $region3: #{tpu_custom_call.1} parent=0 // pred_check_branch
    %12 = sbr.rel (0) target = $region5
  $region4: #{tpu_custom_call.1} parent=0 // pred_region
    _
  $region5: #{tpu_custom_call.1} parent=0 // pred_fallthru
    _
  // Predicated region
  $region6: #{tpu_custom_call.1} parent=0 // pred_check
    _
  $region7: #{tpu_custom_call.1} parent=0 // pred_check_branch
    %14 = sbr.rel (0) target = $region9
  $region8: #{tpu_custom_call.1} parent=0 // pred_region
    _
  $region9: #{tpu_custom_call.1} parent=0 // pred_fallthru
    _
  // Predicated region
  $region10: #{tpu_custom_call.1} parent=0 // pred_check
    _
  $region11: #{tpu_custom_call.1} parent=0 // pred_check_branch
    %16 = sbr.rel (0) target = $region13
  $region12: #{tpu_custom_call.1} parent=0 // pred_region
    _
  $region13: #{tpu_custom_call.1} parent=0 // pred_fallthru
    _
  // Predicated region
  $region14: #{tpu_custom_call.1} parent=0 // pred_check
    _
  $region15: #{tpu_custom_call.1} parent=0 // pred_check_branch
    %18 = sbr.rel (0) target = $region17
  $region16: #{tpu_custom_call.1} parent=0 // pred_region
    _
  $region17: #{tpu_custom_call.1} parent=0 // pred_fallthru
    _
  // Predicated region
  $region18: #{tpu_custom_call.1} parent=0 // pred_check
    _
  $region19: #{tpu_custom_call.1} parent=0 // pred_check_branch
    %20 = sbr.rel (0) target = $region21
  $region20: #{tpu_custom_call.1} parent=0 // pred_region
    _
  $region21: #{tpu_custom_call.1} parent=0 // pred_fallthru
    _
  // Predicated region
  $region22: #{tpu_custom_call.1} parent=0 // pred_check
    _
  $region23: #{tpu_custom_call.1} parent=0 // pred_check_branch
    %22 = sbr.rel (0) target = $region25
  $region24: #{tpu_custom_call.1} parent=0 // pred_region
    _
  $region25: #{tpu_custom_call.1} parent=0 // pred_fallthru
    _
  %p23 = scmp.eq.s32.totalorder 0, 0
  // Predicated region
  $region26: #{tpu_custom_call.1} parent=0 // pred_check
    %p24 = pneg %p23
  $region27: #{tpu_custom_call.1} parent=0 // pred_check_branch
    %26 = sbr.rel (%p24) target = $region29
  $region28: #{tpu_custom_call.1} parent=0 // pred_region
    %vm27 = vcmask 7168
    %28 = vst.msk [vmem:[#allocation2] sm:$0xff] %vm27, 0.0
    %29 = vst.msk [vmem:[#allocation2 + $0x8] sm:$0xff] %vm27, 0.0
    %30 = vst.msk [vmem:[#allocation2 + $0x10] sm:$0xff] %vm27, 0.0
    %31 = vst.msk [vmem:[#allocation2 + $0x18] sm:$0xff] %vm27, 0.0
    %32 = vst.msk [vmem:[#allocation2 + $0x20] sm:$0xff] %vm27, 0.0
    %33 = vst.msk [vmem:[#allocation2 + $0x28] sm:$0xff] %vm27, 0.0
    %34 = vst.msk [vmem:[#allocation2 + $0x30] sm:$0xff] %vm27, 0.0
    %35 = vst.msk [vmem:[#allocation2 + $0x38] sm:$0xff] %vm27, 0.0
    %36 = vst.msk [vmem:[#allocation2 + $0x40] sm:$0xff] %vm27, 0.0
    %37 = vst.msk [vmem:[#allocation2 + $0x48] sm:$0xff] %vm27, 0.0
    %38 = vst.msk [vmem:[#allocation2 + $0x50] sm:$0xff] %vm27, 0.0
    %39 = vst.msk [vmem:[#allocation2 + $0x58] sm:$0xff] %vm27, 0.0
    %40 = vst.msk [vmem:[#allocation2 + $0x60] sm:$0xff] %vm27, 0.0
    %41 = vst.msk [vmem:[#allocation2 + $0x68] sm:$0xff] %vm27, 0.0
    %42 = vst.msk [vmem:[#allocation2 + $0x70] sm:$0xff] %vm27, 0.0
    %43 = vst.msk [vmem:[#allocation2 + $0x78] sm:$0xff] %vm27, 0.0
  $region29: #{tpu_custom_call.1} parent=0 // pred_fallthru
    _
  %v44 = vld [vmem:[%s0] sm:$0xff]
  %v45 = vld [vmem:[%s0 + $0x8] sm:$0xff]
  %v46 = vld [vmem:[%s0 + $0x10] sm:$0xff]
  %v47 = vld [vmem:[%s0 + $0x18] sm:$0xff]
  %v48 = vld [vmem:[%s0 + $0x20] sm:$0xff]
  %v49 = vld [vmem:[%s0 + $0x28] sm:$0xff]
  %v50 = vld [vmem:[%s0 + $0x30] sm:$0xff]
  %v51 = vld [vmem:[%s0 + $0x38] sm:$0xff]
  %v52 = vld [vmem:[%s0 + $0x40] sm:$0xff]
  %v53 = vld [vmem:[%s0 + $0x48] sm:$0xff]
  %v54 = vld [vmem:[%s0 + $0x50] sm:$0xff]
  %v55 = vld [vmem:[%s0 + $0x58] sm:$0xff]
  %v56 = vld [vmem:[%s0 + $0x60] sm:$0xff]
  %v57 = vld [vmem:[%s0 + $0x68] sm:$0xff]
  %v58 = vld [vmem:[%s0 + $0x70] sm:$0xff]
  %v59 = vld [vmem:[%s0 + $0x78] sm:$0xff]
  %v60 = vld [vmem:[%s1] sm:$0xff]
  %v61 = vld [vmem:[%s1 + $0x8] sm:$0xff]
  %v62 = vld [vmem:[%s1 + $0x10] sm:$0xff]
  %v63 = vld [vmem:[%s1 + $0x18] sm:$0xff]
  %v64 = vld [vmem:[%s1 + $0x20] sm:$0xff]
  %v65 = vld [vmem:[%s1 + $0x28] sm:$0xff]
  %v66 = vld [vmem:[%s1 + $0x30] sm:$0xff]
  %v67 = vld [vmem:[%s1 + $0x38] sm:$0xff]
  %v68 = vld [vmem:[%s1 + $0x40] sm:$0xff]
  %v69 = vld [vmem:[%s1 + $0x48] sm:$0xff]
  %v70 = vld [vmem:[%s1 + $0x50] sm:$0xff]
  %v71 = vld [vmem:[%s1 + $0x58] sm:$0xff]
  %v72 = vld [vmem:[%s1 + $0x60] sm:$0xff]
  %v73 = vld [vmem:[%s1 + $0x68] sm:$0xff]
  %v74 = vld [vmem:[%s1 + $0x70] sm:$0xff]
  %v75 = vld [vmem:[%s1 + $0x78] sm:$0xff]
  %vm76 = vcmask 261120
  %v78 = vsel %vm76, %v44, 0
  %v81 = vsel %vm76, %v45, 0
  %v84 = vsel %vm76, %v46, 0
  %v87 = vsel %vm76, %v47, 0
  %v90 = vsel %vm76, %v48, 0
  %v93 = vsel %vm76, %v49, 0
  %v96 = vsel %vm76, %v50, 0
  %v99 = vsel %vm76, %v51, 0
  %v102 = vsel %vm76, %v52, 0
  %v105 = vsel %vm76, %v53, 0
  %v108 = vsel %vm76, %v54, 0
  %v111 = vsel %vm76, %v55, 0
  %v114 = vsel %vm76, %v56, 0
  %v117 = vsel %vm76, %v57, 0
  %v120 = vsel %vm76, %v58, 0
  %v123 = vsel %vm76, %v59, 0
  %v126 = vsel %vm76, %v60, 0
  %v129 = vsel %vm76, %v61, 0
  %v132 = vsel %vm76, %v62, 0
  %v135 = vsel %vm76, %v63, 0
  %v138 = vsel %vm76, %v64, 0
  %v141 = vsel %vm76, %v65, 0
  %v144 = vsel %vm76, %v66, 0
  %v147 = vsel %vm76, %v67, 0
  %v150 = vsel %vm76, %v68, 0
  %v153 = vsel %vm76, %v69, 0
  %v156 = vsel %vm76, %v70, 0
  %v159 = vsel %vm76, %v71, 0
  %v162 = vsel %vm76, %v72, 0
  %v165 = vsel %vm76, %v73, 0
  %v168 = vsel %vm76, %v74, 0
  %v171 = vsel %vm76, %v75, 0
  %173 = vmatprep.subr.mxu0 0.0
  %174 = vmatpush1.xpose.msra.mxu0 %v126
  %175 = vmatprep.subr.mxu0 0.0
  %176 = vmatpush1.xpose.msra.mxu0 %v129
  %177 = vmatprep.subr.mxu0 0.0
  %178 = vmatpush1.xpose.msra.mxu0 %v132
  %179 = vmatprep.subr.mxu0 0.0
  %180 = vmatpush1.xpose.msra.mxu0 %v135
  %181 = vmatprep.subr.mxu0 0.0
  %182 = vmatpush1.xpose.msra.mxu0 %v138
  %183 = vmatprep.subr.mxu0 0.0
  %184 = vmatpush1.xpose.msra.mxu0 %v141
  %185 = vmatprep.subr.mxu0 0.0
  %186 = vmatpush1.xpose.msra.mxu0 %v144
  %187 = vmatprep.subr.mxu0 0.0
  %188 = vmatpush1.xpose.msra.mxu0 %v147
  %189 = vmatprep.subr.mxu0 0.0
  %190 = vmatpush1.xpose.msra.mxu0 %v150
  %191 = vmatprep.subr.mxu0 0.0
  %192 = vmatpush1.xpose.msra.mxu0 %v153
  %193 = vmatprep.subr.mxu0 0.0
  %194 = vmatpush1.xpose.msra.mxu0 %v156
  %195 = vmatprep.subr.mxu0 0.0
  %196 = vmatpush1.xpose.msra.mxu0 %v159
  %197 = vmatprep.subr.mxu0 0.0
  %198 = vmatpush1.xpose.msra.mxu0 %v162
  %199 = vmatprep.subr.mxu0 0.0
  %200 = vmatpush1.xpose.msra.mxu0 %v165
  %201 = vmatprep.subr.mxu0 0.0
  %202 = vmatpush1.xpose.msra.mxu0 %v168
  %203 = vmatprep.subr.mxu0 0.0
  %204 = vmatpush1.xpose.msra.mxu0 %v171
  %205 = vmatprep.subr.mxu0 0.0
  %206 = vmatpush1.xpose.msra.mxu0 0.0
  %207 = vmatprep.subr.mxu0 0.0
  %208 = vmatpush1.xpose.msra.mxu0 0.0
  %209 = vmatprep.subr.mxu0 0.0
  %210 = vmatpush1.xpose.msra.mxu0 0.0
  %211 = vmatprep.subr.mxu0 0.0
  %212 = vmatpush1.xpose.msra.mxu0 0.0
  %213 = vmatprep.subr.mxu0 0.0
  %214 = vmatpush1.xpose.msra.mxu0 0.0
  %215 = vmatprep.subr.mxu0 0.0
  %216 = vmatpush1.xpose.msra.mxu0 0.0
  %217 = vmatprep.subr.mxu0 0.0
  %218 = vmatpush1.xpose.msra.mxu0 0.0
  %219 = vmatprep.subr.mxu0 0.0
  %220 = vmatpush1.xpose.msra.mxu0 0.0
  %221 = vmatprep.subr.mxu0 0.0
  %222 = vmatpush1.xpose.msra.mxu0 0.0
  %223 = vmatprep.subr.mxu0 0.0
  %224 = vmatpush1.xpose.msra.mxu0 0.0
  %225 = vmatprep.subr.mxu0 0.0
  %226 = vmatpush1.xpose.msra.mxu0 0.0
  %227 = vmatprep.subr.mxu0 0.0
  %228 = vmatpush1.xpose.msra.mxu0 0.0
  %229 = vmatprep.subr.mxu0 0.0
  %230 = vmatpush1.xpose.msra.mxu0 0.0
  %231 = vmatprep.subr.mxu0 0.0
  %232 = vmatpush1.xpose.msra.mxu0 0.0
  %233 = vmatprep.subr.mxu0 0.0
  %234 = vmatpush1.xpose.msra.mxu0 0.0
  %235 = vmatprep.subr.mxu0 0.0
  %236 = vmatpush1.xpose.msra.mxu0 0.0
  %237 = vmatprep.mubr.f32.mxu0 0.0
  %238 = vmatmul.mubr.f32.gmra.mrb[0].mxu0 %v78
  %v239 = vpop.f32.mrb[0].mxu0
  %v240 = vadd.f32 0.0, %v239
  %v241 = vpop.f32.mrb[0].mxu0
  %242 = vmatprep.mubr.f32.mxu0 0.0
  %243 = vmatmul.mubr.f32.gmra.mrb[0].mxu0 %v81
  %v244 = vpop.f32.mrb[0].mxu0
  %v245 = vadd.f32 0.0, %v244
  %v246 = vpop.f32.mrb[0].mxu0
  %247 = vmatprep.mubr.f32.mxu0 0.0
  %248 = vmatmul.mubr.f32.gmra.mrb[0].mxu0 %v84
  %v249 = vpop.f32.mrb[0].mxu0
  %v250 = vadd.f32 0.0, %v249
  %v251 = vpop.f32.mrb[0].mxu0
  %252 = vmatprep.mubr.f32.mxu0 0.0
  %253 = vmatmul.mubr.f32.gmra.mrb[0].mxu0 %v87
  %v254 = vpop.f32.mrb[0].mxu0
  %v255 = vadd.f32 0.0, %v254
  %v256 = vpop.f32.mrb[0].mxu0
  %257 = vmatprep.mubr.f32.mxu0 0.0
  %258 = vmatmul.mubr.f32.gmra.mrb[0].mxu0 %v90
  %v259 = vpop.f32.mrb[0].mxu0
  %v260 = vadd.f32 0.0, %v259
  %v261 = vpop.f32.mrb[0].mxu0
  %262 = vmatprep.mubr.f32.mxu0 0.0
  %263 = vmatmul.mubr.f32.gmra.mrb[0].mxu0 %v93
  %v264 = vpop.f32.mrb[0].mxu0
  %v265 = vadd.f32 0.0, %v264
  %v266 = vpop.f32.mrb[0].mxu0
  %267 = vmatprep.mubr.f32.mxu0 0.0
  %268 = vmatmul.mubr.f32.gmra.mrb[0].mxu0 %v96
  %v269 = vpop.f32.mrb[0].mxu0
  %v270 = vadd.f32 0.0, %v269
  %v271 = vpop.f32.mrb[0].mxu0
  %272 = vmatprep.mubr.f32.mxu0 0.0
  %273 = vmatmul.mubr.f32.gmra.mrb[0].mxu0 %v99
  %v274 = vpop.f32.mrb[0].mxu0
  %v275 = vadd.f32 0.0, %v274
  %v276 = vpop.f32.mrb[0].mxu0
  %277 = vmatprep.mubr.f32.mxu0 0.0
  %278 = vmatmul.mubr.f32.gmra.mrb[0].mxu0 %v102
  %v279 = vpop.f32.mrb[0].mxu0
  %v280 = vadd.f32 0.0, %v279
  %v281 = vpop.f32.mrb[0].mxu0
  %282 = vmatprep.mubr.f32.mxu0 0.0
  %283 = vmatmul.mubr.f32.gmra.mrb[0].mxu0 %v105
  %v284 = vpop.f32.mrb[0].mxu0
  %v285 = vadd.f32 0.0, %v284
  %v286 = vpop.f32.mrb[0].mxu0
  %287 = vmatprep.mubr.f32.mxu0 0.0
  %288 = vmatmul.mubr.f32.gmra.mrb[0].mxu0 %v108
  %v289 = vpop.f32.mrb[0].mxu0
  %v290 = vadd.f32 0.0, %v289
  %v291 = vpop.f32.mrb[0].mxu0
  %292 = vmatprep.mubr.f32.mxu0 0.0
  %293 = vmatmul.mubr.f32.gmra.mrb[0].mxu0 %v111
  %v294 = vpop.f32.mrb[0].mxu0
  %v295 = vadd.f32 0.0, %v294
  %v296 = vpop.f32.mrb[0].mxu0
  %297 = vmatprep.mubr.f32.mxu0 0.0
  %298 = vmatmul.mubr.f32.gmra.mrb[0].mxu0 %v114
  %v299 = vpop.f32.mrb[0].mxu0
  %v300 = vadd.f32 0.0, %v299
  %v301 = vpop.f32.mrb[0].mxu0
  %302 = vmatprep.mubr.f32.mxu0 0.0
  %303 = vmatmul.mubr.f32.gmra.mrb[0].mxu0 %v117
  %v304 = vpop.f32.mrb[0].mxu0
  %v305 = vadd.f32 0.0, %v304
  %v306 = vpop.f32.mrb[0].mxu0
  %307 = vmatprep.mubr.f32.mxu0 0.0
  %308 = vmatmul.mubr.f32.gmra.mrb[0].mxu0 %v120
  %v309 = vpop.f32.mrb[0].mxu0
  %v310 = vadd.f32 0.0, %v309
  %v311 = vpop.f32.mrb[0].mxu0
  %312 = vmatprep.mubr.f32.mxu0 0.0
  %313 = vmatmul.mubr.f32.gmra.mrb[0].mxu0 %v123
  %v314 = vpop.f32.mrb[0].mxu0
  %v315 = vadd.f32 0.0, %v314
  %v316 = vpop.f32.mrb[0].mxu0
  %317 = vdwg.mxu0
  %v318 = vld [vmem:[%s2] sm:$0xff]
  %v319 = vld [vmem:[%s2 + $0x8] sm:$0xff]
  %v320 = vld [vmem:[%s2 + $0x10] sm:$0xff]
  %v321 = vld [vmem:[%s2 + $0x18] sm:$0xff]
  %v322 = vld [vmem:[%s2 + $0x20] sm:$0xff]
  %v323 = vld [vmem:[%s2 + $0x28] sm:$0xff]
  %v324 = vld [vmem:[%s2 + $0x30] sm:$0xff]
  %v325 = vld [vmem:[%s2 + $0x38] sm:$0xff]
  %v326 = vld [vmem:[%s2 + $0x40] sm:$0xff]
  %v327 = vld [vmem:[%s2 + $0x48] sm:$0xff]
  %v328 = vld [vmem:[%s2 + $0x50] sm:$0xff]
  %v329 = vld [vmem:[%s2 + $0x58] sm:$0xff]
  %v330 = vld [vmem:[%s2 + $0x60] sm:$0xff]
  %v331 = vld [vmem:[%s2 + $0x68] sm:$0xff]
  %v332 = vld [vmem:[%s2 + $0x70] sm:$0xff]
  %v333 = vld [vmem:[%s2 + $0x78] sm:$0xff]
  %v334 = vld [vmem:[%s3] sm:$0x1]
  %336 = vset.pattern.permute.xlu0 0
  %337 = vperm.xlu0 %336, %v318
  %v338 = vpop.permute.xlu0 %337
  %341 = vset.pattern.permute.xlu0 0
  %342 = vperm.xlu0 %341, %v319
  %v343 = vpop.permute.xlu0 %342
  %346 = vset.pattern.permute.xlu0 0
  %347 = vperm.xlu0 %346, %v320
  %v348 = vpop.permute.xlu0 %347
  %351 = vset.pattern.permute.xlu0 0
  %352 = vperm.xlu0 %351, %v321
  %v353 = vpop.permute.xlu0 %352
  %356 = vset.pattern.permute.xlu0 0
  %357 = vperm.xlu0 %356, %v322
  %v358 = vpop.permute.xlu0 %357
  %361 = vset.pattern.permute.xlu0 0
  %362 = vperm.xlu0 %361, %v323
  %v363 = vpop.permute.xlu0 %362
  %366 = vset.pattern.permute.xlu0 0
  %367 = vperm.xlu0 %366, %v324
  %v368 = vpop.permute.xlu0 %367
  %371 = vset.pattern.permute.xlu0 0
  %372 = vperm.xlu0 %371, %v325
  %v373 = vpop.permute.xlu0 %372
  %376 = vset.pattern.permute.xlu0 0
  %377 = vperm.xlu0 %376, %v326
  %v378 = vpop.permute.xlu0 %377
  %381 = vset.pattern.permute.xlu0 0
  %382 = vperm.xlu0 %381, %v327
  %v383 = vpop.permute.xlu0 %382
  %386 = vset.pattern.permute.xlu0 0
  %387 = vperm.xlu0 %386, %v328
  %v388 = vpop.permute.xlu0 %387
  %391 = vset.pattern.permute.xlu0 0
  %392 = vperm.xlu0 %391, %v329
  %v393 = vpop.permute.xlu0 %392
  %396 = vset.pattern.permute.xlu0 0
  %397 = vperm.xlu0 %396, %v330
  %v398 = vpop.permute.xlu0 %397
  %401 = vset.pattern.permute.xlu0 0
  %402 = vperm.xlu0 %401, %v331
  %v403 = vpop.permute.xlu0 %402
  %406 = vset.pattern.permute.xlu0 0
  %407 = vperm.xlu0 %406, %v332
  %v408 = vpop.permute.xlu0 %407
  %411 = vset.pattern.permute.xlu0 0
  %412 = vperm.xlu0 %411, %v333
  %v413 = vpop.permute.xlu0 %412
  %v416 = vlaneseq
  %v417 = vshrl.u32 %v416, 7
  %v418 = vsub.s32 0, %v417
  %v419 = vrot.slane %v334, %v418
  %v421 = vadd.f32 %v338, %v419
  %v422 = vadd.f32 %v343, %v419
  %v423 = vadd.f32 %v348, %v419
  %v424 = vadd.f32 %v353, %v419
  %v425 = vadd.f32 %v358, %v419
  %v426 = vadd.f32 %v363, %v419
  %v427 = vadd.f32 %v368, %v419
  %v428 = vadd.f32 %v373, %v419
  %v429 = vadd.f32 %v378, %v419
  %v430 = vadd.f32 %v383, %v419
  %v431 = vadd.f32 %v388, %v419
  %v432 = vadd.f32 %v393, %v419
  %v433 = vadd.f32 %v398, %v419
  %v434 = vadd.f32 %v403, %v419
  %v435 = vadd.f32 %v408, %v419
  %v436 = vadd.f32 %v413, %v419
  %v437 = vmul.f32 %v240, 2.0
  %v438 = vmul.f32 %v245, 2.0
  %v439 = vmul.f32 %v250, 2.0
  %v440 = vmul.f32 %v255, 2.0
  %v441 = vmul.f32 %v260, 2.0
  %v442 = vmul.f32 %v265, 2.0
  %v443 = vmul.f32 %v270, 2.0
  %v444 = vmul.f32 %v275, 2.0
  %v445 = vmul.f32 %v280, 2.0
  %v446 = vmul.f32 %v285, 2.0
  %v447 = vmul.f32 %v290, 2.0
  %v448 = vmul.f32 %v295, 2.0
  %v449 = vmul.f32 %v300, 2.0
  %v450 = vmul.f32 %v305, 2.0
  %v451 = vmul.f32 %v310, 2.0
  %v452 = vmul.f32 %v315, 2.0
  %v453 = vsub.f32 %v421, %v437
  %v454 = vsub.f32 %v422, %v438
  %v455 = vsub.f32 %v423, %v439
  %v456 = vsub.f32 %v424, %v440
  %v457 = vsub.f32 %v425, %v441
  %v458 = vsub.f32 %v426, %v442
  %v459 = vsub.f32 %v427, %v443
  %v460 = vsub.f32 %v428, %v444
  %v461 = vsub.f32 %v429, %v445
  %v462 = vsub.f32 %v430, %v446
  %v463 = vsub.f32 %v431, %v447
  %v464 = vsub.f32 %v432, %v448
  %v465 = vsub.f32 %v433, %v449
  %v466 = vsub.f32 %v434, %v450
  %v467 = vsub.f32 %v435, %v451
  %v468 = vsub.f32 %v436, %v452
  %v469 = vmax.f32 %v453, 0.0
  %v470 = vmax.f32 %v454, 0.0
  %v471 = vmax.f32 %v455, 0.0
  %v472 = vmax.f32 %v456, 0.0
  %v473 = vmax.f32 %v457, 0.0
  %v474 = vmax.f32 %v458, 0.0
  %v475 = vmax.f32 %v459, 0.0
  %v476 = vmax.f32 %v460, 0.0
  %v477 = vmax.f32 %v461, 0.0
  %v478 = vmax.f32 %v462, 0.0
  %v479 = vmax.f32 %v463, 0.0
  %v480 = vmax.f32 %v464, 0.0
  %v481 = vmax.f32 %v465, 0.0
  %v482 = vmax.f32 %v466, 0.0
  %v483 = vmax.f32 %v467, 0.0
  %v484 = vmax.f32 %v468, 0.0
  %v485 = vld [vmem:[%s4] sm:$0xff]
  %v486 = vld [vmem:[%s4 + $0x8] sm:$0xff]
  %v487 = vld [vmem:[%s4 + $0x10] sm:$0xff]
  %v488 = vld [vmem:[%s4 + $0x18] sm:$0xff]
  %v489 = vld [vmem:[%s4 + $0x20] sm:$0xff]
  %v490 = vld [vmem:[%s4 + $0x28] sm:$0xff]
  %v491 = vld [vmem:[%s4 + $0x30] sm:$0xff]
  %v492 = vld [vmem:[%s4 + $0x38] sm:$0xff]
  %v493 = vld [vmem:[%s4 + $0x40] sm:$0xff]
  %v494 = vld [vmem:[%s4 + $0x48] sm:$0xff]
  %v495 = vld [vmem:[%s4 + $0x50] sm:$0xff]
  %v496 = vld [vmem:[%s4 + $0x58] sm:$0xff]
  %v497 = vld [vmem:[%s4 + $0x60] sm:$0xff]
  %v498 = vld [vmem:[%s4 + $0x68] sm:$0xff]
  %v499 = vld [vmem:[%s4 + $0x70] sm:$0xff]
  %v500 = vld [vmem:[%s4 + $0x78] sm:$0xff]
  %v501 = vld [vmem:[%s5] sm:$0x1]
  %502 = vset.pattern.permute.xlu0 0
  %503 = vperm.xlu0 %502, %v485
  %v504 = vpop.permute.xlu0 %503
  %505 = vset.pattern.permute.xlu0 0
  %506 = vperm.xlu0 %505, %v486
  %v507 = vpop.permute.xlu0 %506
  %508 = vset.pattern.permute.xlu0 0
  %509 = vperm.xlu0 %508, %v487
  %v510 = vpop.permute.xlu0 %509
  %511 = vset.pattern.permute.xlu0 0
  %512 = vperm.xlu0 %511, %v488
  %v513 = vpop.permute.xlu0 %512
  %514 = vset.pattern.permute.xlu0 0
  %515 = vperm.xlu0 %514, %v489
  %v516 = vpop.permute.xlu0 %515
  %517 = vset.pattern.permute.xlu0 0
  %518 = vperm.xlu0 %517, %v490
  %v519 = vpop.permute.xlu0 %518
  %520 = vset.pattern.permute.xlu0 0
  %521 = vperm.xlu0 %520, %v491
  %v522 = vpop.permute.xlu0 %521
  %523 = vset.pattern.permute.xlu0 0
  %524 = vperm.xlu0 %523, %v492
  %v525 = vpop.permute.xlu0 %524
  %526 = vset.pattern.permute.xlu0 0
  %527 = vperm.xlu0 %526, %v493
  %v528 = vpop.permute.xlu0 %527
  %529 = vset.pattern.permute.xlu0 0
  %530 = vperm.xlu0 %529, %v494
  %v531 = vpop.permute.xlu0 %530
  %532 = vset.pattern.permute.xlu0 0
  %533 = vperm.xlu0 %532, %v495
  %v534 = vpop.permute.xlu0 %533
  %535 = vset.pattern.permute.xlu0 0
  %536 = vperm.xlu0 %535, %v496
  %v537 = vpop.permute.xlu0 %536
  %538 = vset.pattern.permute.xlu0 0
  %539 = vperm.xlu0 %538, %v497
  %v540 = vpop.permute.xlu0 %539
  %541 = vset.pattern.permute.xlu0 0
  %542 = vperm.xlu0 %541, %v498
  %v543 = vpop.permute.xlu0 %542
  %544 = vset.pattern.permute.xlu0 0
  %545 = vperm.xlu0 %544, %v499
  %v546 = vpop.permute.xlu0 %545
  %547 = vset.pattern.permute.xlu0 0
  %548 = vperm.xlu0 %547, %v500
  %v549 = vpop.permute.xlu0 %548
  %v550 = vlaneseq
  %v551 = vshrl.u32 %v550, 7
  %v552 = vsub.s32 0, %v551
  %v553 = vrot.slane %v501, %v552
  %vm554 = vcmp.eq.s32.totalorder %v504, %v553
  %vm555 = vcmp.eq.s32.totalorder %v507, %v553
  %vm556 = vcmp.eq.s32.totalorder %v510, %v553
  %vm557 = vcmp.eq.s32.totalorder %v513, %v553
  %vm558 = vcmp.eq.s32.totalorder %v516, %v553
  %vm559 = vcmp.eq.s32.totalorder %v519, %v553
  %vm560 = vcmp.eq.s32.totalorder %v522, %v553
  %vm561 = vcmp.eq.s32.totalorder %v525, %v553
  %vm562 = vcmp.eq.s32.totalorder %v528, %v553
  %vm563 = vcmp.eq.s32.totalorder %v531, %v553
  %vm564 = vcmp.eq.s32.totalorder %v534, %v553
  %vm565 = vcmp.eq.s32.totalorder %v537, %v553
  %vm566 = vcmp.eq.s32.totalorder %v540, %v553
  %vm567 = vcmp.eq.s32.totalorder %v543, %v553
  %vm568 = vcmp.eq.s32.totalorder %v546, %v553
  %vm569 = vcmp.eq.s32.totalorder %v549, %v553
  %v570 = vsub.f32 0.5, %v469
  %v571 = vsub.f32 0.5, %v470
  %v572 = vsub.f32 0.5, %v471
  %v573 = vsub.f32 0.5, %v472
  %v574 = vsub.f32 0.5, %v473
  %v575 = vsub.f32 0.5, %v474
  %v576 = vsub.f32 0.5, %v475
  %v577 = vsub.f32 0.5, %v476
  %v578 = vsub.f32 0.5, %v477
  %v579 = vsub.f32 0.5, %v478
  %v580 = vsub.f32 0.5, %v479
  %v581 = vsub.f32 0.5, %v480
  %v582 = vsub.f32 0.5, %v481
  %v583 = vsub.f32 0.5, %v482
  %v584 = vsub.f32 0.5, %v483
  %v585 = vsub.f32 0.5, %v484
  %v586 = vmax.f32 %v570, 0.0
  %v587 = vmax.f32 %v571, 0.0
  %v588 = vmax.f32 %v572, 0.0
  %v589 = vmax.f32 %v573, 0.0
  %v590 = vmax.f32 %v574, 0.0
  %v591 = vmax.f32 %v575, 0.0
  %v592 = vmax.f32 %v576, 0.0
  %v593 = vmax.f32 %v577, 0.0
  %v594 = vmax.f32 %v578, 0.0
  %v595 = vmax.f32 %v579, 0.0
  %v596 = vmax.f32 %v580, 0.0
  %v597 = vmax.f32 %v581, 0.0
  %v598 = vmax.f32 %v582, 0.0
  %v599 = vmax.f32 %v583, 0.0
  %v600 = vmax.f32 %v584, 0.0
  %v601 = vmax.f32 %v585, 0.0
  %v602 = vsel %vm554, %v469, %v586
  %v603 = vsel %vm555, %v470, %v587
  %v604 = vsel %vm556, %v471, %v588
  %v605 = vsel %vm557, %v472, %v589
  %v606 = vsel %vm558, %v473, %v590
  %v607 = vsel %vm559, %v474, %v591
  %v608 = vsel %vm560, %v475, %v592
  %v609 = vsel %vm561, %v476, %v593
  %v610 = vsel %vm562, %v477, %v594
  %v611 = vsel %vm563, %v478, %v595
  %v612 = vsel %vm564, %v479, %v596
  %v613 = vsel %vm565, %v480, %v597
  %v614 = vsel %vm566, %v481, %v598
  %v615 = vsel %vm567, %v482, %v599
  %v616 = vsel %vm568, %v483, %v600
  %v617 = vsel %vm569, %v484, %v601
  %s618 = smul.u32 0, 128
  %v619 = vlaneseq
  %v620 = vshrl.u32 %v619, 7
  %v621 = vadd.s32 %v620, 8
  %v622 = vadd.s32 %v620, 16
  %v623 = vadd.s32 %v620, 24
  %v624 = vadd.s32 %v620, 32
  %v625 = vadd.s32 %v620, 40
  %v626 = vadd.s32 %v620, 48
  %v627 = vadd.s32 %v620, 56
  %v628 = vadd.s32 %v620, 64
  %v629 = vadd.s32 %v620, 72
  %v630 = vadd.s32 %v620, 80
  %v631 = vadd.s32 %v620, 88
  %v632 = vadd.s32 %v620, 96
  %v633 = vadd.s32 %v620, 104
  %v634 = vadd.s32 %v620, 112
  %v635 = vadd.s32 %v620, 120
  %v636 = vstv %s618
  %v637 = vadd.s32 %v636, %v620
  %v638 = vadd.s32 %v636, %v621
  %v639 = vadd.s32 %v636, %v622
  %v640 = vadd.s32 %v636, %v623
  %v641 = vadd.s32 %v636, %v624
  %v642 = vadd.s32 %v636, %v625
  %v643 = vadd.s32 %v636, %v626
  %v644 = vadd.s32 %v636, %v627
  %v645 = vadd.s32 %v636, %v628
  %v646 = vadd.s32 %v636, %v629
  %v647 = vadd.s32 %v636, %v630
  %v648 = vadd.s32 %v636, %v631
  %v649 = vadd.s32 %v636, %v632
  %v650 = vadd.s32 %v636, %v633
  %v651 = vadd.s32 %v636, %v634
  %v652 = vadd.s32 %v636, %v635
  %s653 = smul.u32 0, 128
  %v654 = vlaneseq
  %v655 = vand.u32 %v654, 127
  %v656 = vstv %s653
  %v657 = vadd.s32 %v656, %v655
  %vm658 = vcmp.lt.s32.totalorder %v637, 8
  %vm659 = vcmp.lt.s32.totalorder %v638, 8
  %vm660 = vcmp.lt.s32.totalorder %v639, 8
  %vm661 = vcmp.lt.s32.totalorder %v640, 8
  %vm662 = vcmp.lt.s32.totalorder %v641, 8
  %vm663 = vcmp.lt.s32.totalorder %v642, 8
  %vm664 = vcmp.lt.s32.totalorder %v643, 8
  %vm665 = vcmp.lt.s32.totalorder %v644, 8
  %vm666 = vcmp.lt.s32.totalorder %v645, 8
  %vm667 = vcmp.lt.s32.totalorder %v646, 8
  %vm668 = vcmp.lt.s32.totalorder %v647, 8
  %vm669 = vcmp.lt.s32.totalorder %v648, 8
  %vm670 = vcmp.lt.s32.totalorder %v649, 8
  %vm671 = vcmp.lt.s32.totalorder %v650, 8
  %vm672 = vcmp.lt.s32.totalorder %v651, 8
  %vm673 = vcmp.lt.s32.totalorder %v652, 8
  %vm674 = vcmp.lt.s32.totalorder %v657, 8
  %vm675 = vmand %vm658, %vm674
  %vm676 = vmand %vm659, %vm674
  %vm677 = vmand %vm660, %vm674
  %vm678 = vmand %vm661, %vm674
  %vm679 = vmand %vm662, %vm674
  %vm680 = vmand %vm663, %vm674
  %vm681 = vmand %vm664, %vm674
  %vm682 = vmand %vm665, %vm674
  %vm683 = vmand %vm666, %vm674
  %vm684 = vmand %vm667, %vm674
  %vm685 = vmand %vm668, %vm674
  %vm686 = vmand %vm669, %vm674
  %vm687 = vmand %vm670, %vm674
  %vm688 = vmand %vm671, %vm674
  %vm689 = vmand %vm672, %vm674
  %vm690 = vmand %vm673, %vm674
  %vm691 = vcmp.ne.s32.totalorder %v637, %v657
  %vm692 = vcmp.ne.s32.totalorder %v638, %v657
  %vm693 = vcmp.ne.s32.totalorder %v639, %v657
  %vm694 = vcmp.ne.s32.totalorder %v640, %v657
  %vm695 = vcmp.ne.s32.totalorder %v641, %v657
  %vm696 = vcmp.ne.s32.totalorder %v642, %v657
  %vm697 = vcmp.ne.s32.totalorder %v643, %v657
  %vm698 = vcmp.ne.s32.totalorder %v644, %v657
  %vm699 = vcmp.ne.s32.totalorder %v645, %v657
  %vm700 = vcmp.ne.s32.totalorder %v646, %v657
  %vm701 = vcmp.ne.s32.totalorder %v647, %v657
  %vm702 = vcmp.ne.s32.totalorder %v648, %v657
  %vm703 = vcmp.ne.s32.totalorder %v649, %v657
  %vm704 = vcmp.ne.s32.totalorder %v650, %v657
  %vm705 = vcmp.ne.s32.totalorder %v651, %v657
  %vm706 = vcmp.ne.s32.totalorder %v652, %v657
  %vm707 = vmand %vm675, %vm691
  %vm708 = vmand %vm676, %vm692
  %vm709 = vmand %vm677, %vm693
  %vm710 = vmand %vm678, %vm694
  %vm711 = vmand %vm679, %vm695
  %vm712 = vmand %vm680, %vm696
  %vm713 = vmand %vm681, %vm697
  %vm714 = vmand %vm682, %vm698
  %vm715 = vmand %vm683, %vm699
  %vm716 = vmand %vm684, %vm700
  %vm717 = vmand %vm685, %vm701
  %vm718 = vmand %vm686, %vm702
  %vm719 = vmand %vm687, %vm703
  %vm720 = vmand %vm688, %vm704
  %vm721 = vmand %vm689, %vm705
  %vm722 = vmand %vm690, %vm706
  %v723 = vsel %vm707, %v602, 0.0
  %v724 = vsel %vm708, %v603, 0.0
  %v725 = vsel %vm709, %v604, 0.0
  %v726 = vsel %vm710, %v605, 0.0
  %v727 = vsel %vm711, %v606, 0.0
  %v728 = vsel %vm712, %v607, 0.0
  %v729 = vsel %vm713, %v608, 0.0
  %v730 = vsel %vm714, %v609, 0.0
  %v731 = vsel %vm715, %v610, 0.0
  %v732 = vsel %vm716, %v611, 0.0
  %v733 = vsel %vm717, %v612, 0.0
  %v734 = vsel %vm718, %v613, 0.0
  %v735 = vsel %vm719, %v614, 0.0
  %v736 = vsel %vm720, %v615, 0.0
  %v737 = vsel %vm721, %v616, 0.0
  %v738 = vsel %vm722, %v617, 0.0
  %v739 = vld [vmem:[#allocation2] sm:$0xff]
  %v740 = vld [vmem:[#allocation2 + $0x8] sm:$0xff]
  %v741 = vld [vmem:[#allocation2 + $0x10] sm:$0xff]
  %v742 = vld [vmem:[#allocation2 + $0x18] sm:$0xff]
  %v743 = vld [vmem:[#allocation2 + $0x20] sm:$0xff]
  %v744 = vld [vmem:[#allocation2 + $0x28] sm:$0xff]
  %v745 = vld [vmem:[#allocation2 + $0x30] sm:$0xff]
  %v746 = vld [vmem:[#allocation2 + $0x38] sm:$0xff]
  %v747 = vld [vmem:[#allocation2 + $0x40] sm:$0xff]
  %v748 = vld [vmem:[#allocation2 + $0x48] sm:$0xff]
  %v749 = vld [vmem:[#allocation2 + $0x50] sm:$0xff]
  %v750 = vld [vmem:[#allocation2 + $0x58] sm:$0xff]
  %v751 = vld [vmem:[#allocation2 + $0x60] sm:$0xff]
  %v752 = vld [vmem:[#allocation2 + $0x68] sm:$0xff]
  %v753 = vld [vmem:[#allocation2 + $0x70] sm:$0xff]
  %v754 = vld [vmem:[#allocation2 + $0x78] sm:$0xff]
  %755 = vadd.xlane.f32.xlu0 %v723
  %v756 = vpop.xlane.xlu0 %755
  %757 = vadd.xlane.f32.xlu0 %v724
  %v758 = vpop.xlane.xlu0 %757
  %759 = vadd.xlane.f32.xlu0 %v725
  %v760 = vpop.xlane.xlu0 %759
  %761 = vadd.xlane.f32.xlu0 %v726
  %v762 = vpop.xlane.xlu0 %761
  %763 = vadd.xlane.f32.xlu0 %v727
  %v764 = vpop.xlane.xlu0 %763
  %765 = vadd.xlane.f32.xlu0 %v728
  %v766 = vpop.xlane.xlu0 %765
  %767 = vadd.xlane.f32.xlu0 %v729
  %v768 = vpop.xlane.xlu0 %767
  %769 = vadd.xlane.f32.xlu0 %v730
  %v770 = vpop.xlane.xlu0 %769
  %771 = vadd.xlane.f32.xlu0 %v731
  %v772 = vpop.xlane.xlu0 %771
  %773 = vadd.xlane.f32.xlu0 %v732
  %v774 = vpop.xlane.xlu0 %773
  %775 = vadd.xlane.f32.xlu0 %v733
  %v776 = vpop.xlane.xlu0 %775
  %777 = vadd.xlane.f32.xlu0 %v734
  %v778 = vpop.xlane.xlu0 %777
  %779 = vadd.xlane.f32.xlu0 %v735
  %v780 = vpop.xlane.xlu0 %779
  %781 = vadd.xlane.f32.xlu0 %v736
  %v782 = vpop.xlane.xlu0 %781
  %783 = vadd.xlane.f32.xlu0 %v737
  %v784 = vpop.xlane.xlu0 %783
  %785 = vadd.xlane.f32.xlu0 %v738
  %v786 = vpop.xlane.xlu0 %785
  %v787 = vadd.f32 %v739, %v756
  %v788 = vadd.f32 %v740, %v758
  %v789 = vadd.f32 %v741, %v760
  %v790 = vadd.f32 %v742, %v762
  %v791 = vadd.f32 %v743, %v764
  %v792 = vadd.f32 %v744, %v766
  %v793 = vadd.f32 %v745, %v768
  %v794 = vadd.f32 %v746, %v770
  %v795 = vadd.f32 %v747, %v772
  %v796 = vadd.f32 %v748, %v774
  %v797 = vadd.f32 %v749, %v776
  %v798 = vadd.f32 %v750, %v778
  %v799 = vadd.f32 %v751, %v780
  %v800 = vadd.f32 %v752, %v782
  %v801 = vadd.f32 %v753, %v784
  %v802 = vadd.f32 %v754, %v786
  %vm803 = vcmask 7168
  %804 = vst.msk [vmem:[#allocation2] sm:$0xff] %vm803, %v787
  %805 = vst.msk [vmem:[#allocation2 + $0x8] sm:$0xff] %vm803, %v788
  %806 = vst.msk [vmem:[#allocation2 + $0x10] sm:$0xff] %vm803, %v789
  %807 = vst.msk [vmem:[#allocation2 + $0x18] sm:$0xff] %vm803, %v790
  %808 = vst.msk [vmem:[#allocation2 + $0x20] sm:$0xff] %vm803, %v791
  %809 = vst.msk [vmem:[#allocation2 + $0x28] sm:$0xff] %vm803, %v792
  %810 = vst.msk [vmem:[#allocation2 + $0x30] sm:$0xff] %vm803, %v793
  %811 = vst.msk [vmem:[#allocation2 + $0x38] sm:$0xff] %vm803, %v794
  %812 = vst.msk [vmem:[#allocation2 + $0x40] sm:$0xff] %vm803, %v795
  %813 = vst.msk [vmem:[#allocation2 + $0x48] sm:$0xff] %vm803, %v796
  %814 = vst.msk [vmem:[#allocation2 + $0x50] sm:$0xff] %vm803, %v797
  %815 = vst.msk [vmem:[#allocation2 + $0x58] sm:$0xff] %vm803, %v798
  %816 = vst.msk [vmem:[#allocation2 + $0x60] sm:$0xff] %vm803, %v799
  %817 = vst.msk [vmem:[#allocation2 + $0x68] sm:$0xff] %vm803, %v800
  %818 = vst.msk [vmem:[#allocation2 + $0x70] sm:$0xff] %vm803, %v801
  %819 = vst.msk [vmem:[#allocation2 + $0x78] sm:$0xff] %vm803, %v802
  // Predicated region
  $region30: #{tpu_custom_call.1} parent=0 // pred_check
    %p820 = pneg %p23
  $region31: #{tpu_custom_call.1} parent=0 // pred_check_branch
    %822 = sbr.rel (%p820) target = $region33
  $region32: #{tpu_custom_call.1} parent=0 // pred_region
    %v823 = vld [vmem:[#allocation2] sm:$0xff]
    %v824 = vld [vmem:[#allocation2 + $0x8] sm:$0xff]
    %v825 = vld [vmem:[#allocation2 + $0x10] sm:$0xff]
    %v826 = vld [vmem:[#allocation2 + $0x18] sm:$0xff]
    %v827 = vld [vmem:[#allocation2 + $0x20] sm:$0xff]
    %v828 = vld [vmem:[#allocation2 + $0x28] sm:$0xff]
    %v829 = vld [vmem:[#allocation2 + $0x30] sm:$0xff]
    %v830 = vld [vmem:[#allocation2 + $0x38] sm:$0xff]
    %v831 = vld [vmem:[#allocation2 + $0x40] sm:$0xff]
    %v832 = vld [vmem:[#allocation2 + $0x48] sm:$0xff]
    %v833 = vld [vmem:[#allocation2 + $0x50] sm:$0xff]
    %v834 = vld [vmem:[#allocation2 + $0x58] sm:$0xff]
    %v835 = vld [vmem:[#allocation2 + $0x60] sm:$0xff]
    %v836 = vld [vmem:[#allocation2 + $0x68] sm:$0xff]
    %v837 = vld [vmem:[#allocation2 + $0x70] sm:$0xff]
    %v838 = vld [vmem:[#allocation2 + $0x78] sm:$0xff]
    %839 = vst.msk [vmem:[%s6] sm:$0xff] %vm803, %v823
    %840 = vst.msk [vmem:[%s6 + $0x8] sm:$0xff] %vm803, %v824
    %841 = vst.msk [vmem:[%s6 + $0x10] sm:$0xff] %vm803, %v825
    %842 = vst.msk [vmem:[%s6 + $0x18] sm:$0xff] %vm803, %v826
    %843 = vst.msk [vmem:[%s6 + $0x20] sm:$0xff] %vm803, %v827
    %844 = vst.msk [vmem:[%s6 + $0x28] sm:$0xff] %vm803, %v828
    %845 = vst.msk [vmem:[%s6 + $0x30] sm:$0xff] %vm803, %v829
    %846 = vst.msk [vmem:[%s6 + $0x38] sm:$0xff] %vm803, %v830
    %847 = vst.msk [vmem:[%s6 + $0x40] sm:$0xff] %vm803, %v831
    %848 = vst.msk [vmem:[%s6 + $0x48] sm:$0xff] %vm803, %v832
    %849 = vst.msk [vmem:[%s6 + $0x50] sm:$0xff] %vm803, %v833
    %850 = vst.msk [vmem:[%s6 + $0x58] sm:$0xff] %vm803, %v834
    %851 = vst.msk [vmem:[%s6 + $0x60] sm:$0xff] %vm803, %v835
    %852 = vst.msk [vmem:[%s6 + $0x68] sm:$0xff] %vm803, %v836
    %853 = vst.msk [vmem:[%s6 + $0x70] sm:$0xff] %vm803, %v837
    %854 = vst.msk [vmem:[%s6 + $0x78] sm:$0xff] %vm803, %v838
  $region33: #{tpu_custom_call.1} parent=0 // pred_fallthru
    _
  // Predicated region
  $region34: #{tpu_custom_call.1} parent=0 // pred_check
    _
  $region35: #{tpu_custom_call.1} parent=0 // pred_check_branch
    %856 = sbr.rel (0) target = $region37
  $region36: #{tpu_custom_call.1} parent=0 // pred_region
    _
  $region37: #{tpu_custom_call.1} parent=0 // pred_fallthru
    _
  // Predicated region
  $region38: #{tpu_custom_call.1} parent=0 // pred_check
    _
  $region39: #{tpu_custom_call.1} parent=0 // pred_check_branch
    %858 = sbr.rel (0) target = $region41
  $region40: #{tpu_custom_call.1} parent=0 // pred_region
    _
  $region41: #{tpu_custom_call.1} parent=0 // pred_fallthru
    _

</llo_original>
